<compile_context>
chip_gen: v5e
topology: v5e:2x2
jax: 0.10.0
libtpu: 0.0.40
codegen_flags: <defaults>
</compile_context>

<pallas_src>
import functools

import jax
import jax.numpy as jnp
from jax import lax
from jax.experimental import pallas as pl
from jax.experimental.pallas import tpu as pltpu


def _dwsep_kernel(x_ref, dw_ref, b1_ref, pw_ref, s2_ref, b2_ref, out_ref, *,
                  H, W, Cin, Cout, batch_tile, mxu_bf16):
    """One grid step == one batch tile of images.

    x_ref : (bt, H+2, (W+2)*Cin)  zero-haloed, lane-packed input block (VMEM)
    dw_ref: (9, W*Cin)            depthwise taps, BN1 scale folded, lane-tiled
    b1_ref: (1, W*Cin)            folded BN1 bias, lane-tiled
    pw_ref: (W*Cin, W*Cout)       block-diagonal pointwise weight (bf16 or f32)
    s2_ref: (1, W*Cout)           BN2 scale (f32), lane-tiled
    b2_ref: (1, W*Cout)           folded BN2 bias (f32), lane-tiled
    out_ref:(bt, H, W*Cout)       lane-packed output block
    """
    WCi = W * Cin
    WCo = W * Cout
    bt = batch_tile

    # Single load of the haloed block; the 9 taps below are value slices of it.
    x = x_ref[...]                                   # (bt, H+2, (W+2)*Cin) f32
    dw = dw_ref[...]                                 # (9, W*Cin)

    # Depthwise 3x3 "same" conv: 9 shifted windows (row offsets 0/1/2, lane
    # offsets 0/Cin/2*Cin into the zero halo), each a full-width f32 VPU FMA.
    # BN1 scale is already folded into the tap weights.
    acc = x[:, 0:H, 0:WCi] * dw[0:1, :][None]
    for k in range(1, 9):
        kh, kw = divmod(k, 3)
        window = x[:, kh:kh + H, kw * Cin:kw * Cin + WCi]
        acc = acc + window * dw[k:k + 1, :][None]

    # BN1 bias + ReLU6.
    y = jnp.clip(acc + b1_ref[...][None], 0.0, 6.0)  # (bt, H, W*Cin)

    # Pointwise 1x1 conv as ONE block-diagonal MXU matmul over the whole batch
    # tile (M = bt*H, K = W*Cin, N = W*Cout); result is already lane-packed.
    y2d = y.reshape(bt * H, WCi)                     # merge leading dims only
    if mxu_bf16:
        y2d = y2d.astype(jnp.bfloat16)
    z = jnp.dot(y2d, pw_ref[...], preferred_element_type=jnp.float32)

    # BN2 scale (kept in f32, not folded into the bf16 weight) + bias + ReLU6.
    z = jnp.clip(z * s2_ref[...] + b2_ref[...], 0.0, 6.0)

    # Lane-dense store: (bt, H, W*Cout) with W*Cout == 128 -> unmasked vst.
    out_ref[...] = z.reshape(bt, H, WCo)


def _round_up(v, m):
    return (v + m - 1) // m * m


def _pick_batch_tile(N, H, W, Cin, Cout, *, min_steps=8,
                     vmem_budget_bytes=24 << 20):
    """Largest divisor of N that (a) fits a conservative VMEM budget and
    (b) leaves at least `min_steps` grid steps (v7x: 2 TCs + pipeline overlap).
    Footprints use the padded (sublane->8, lane->128) layout; in/out blocks
    are double-buffered by the BlockSpec pipeline."""
    in_img = _round_up(H + 2, 8) * _round_up((W + 2) * Cin, 128) * 4 * 2
    out_img = _round_up(H, 8) * _round_up(W * Cout, 128) * 4 * 2
    per_image = in_img + out_img
    bt = max(1, min(N,
                    vmem_budget_bytes // max(per_image, 1),
                    max(1, N // max(min_steps, 1))))
    while N % bt:
        bt -= 1
    return bt


def depthwise_separable_conv_v2(x_nchw, dw_w, pw_w, bn1, bn2, *, eps=1e-5,
                                batch_tile=None, mxu_bf16=True,
                                min_grid_steps=8):
    """PyTorch-layout entry point.

    x_nchw: (N, Cin, H, W) f32
    dw_w  : (Cin, 1, 3, 3)   depthwise conv weight (PyTorch layout, no bias)
    pw_w  : (Cout, Cin, 1, 1) pointwise conv weight (no bias)
    bn1   : (gamma, beta, running_mean, running_var) over Cin
    bn2   : (gamma, beta, running_mean, running_var) over Cout
    Returns (N, Cout, H, W) f32.
    """
    N, Cin, H, W = x_nchw.shape
    Cout = pw_w.shape[0]
    assert dw_w.shape == (Cin, 1, 3, 3)
    assert pw_w.shape == (Cout, Cin, 1, 1)

    gamma1, beta1, mean1, var1 = bn1
    gamma2, beta2, mean2, var2 = bn2
    inv1 = gamma1 / jnp.sqrt(var1 + eps)
    inv2 = gamma2 / jnp.sqrt(var2 + eps)

    # --- weight prep (all in the wrapper, once) -----------------------------
    # Depthwise taps with BN1 scale folded in, tiled to lane width (9, W*Cin).
    dw_hwc = jnp.transpose(dw_w[:, 0], (1, 2, 0))                 # (3, 3, Cin)
    dw_tile = jnp.tile((dw_hwc * inv1[None, None, :]).reshape(9, Cin), (1, W))
    b1_tile = jnp.tile((beta1 - mean1 * inv1)[None, :], (1, W))   # (1, W*Cin)

    # Block-diagonal pointwise weight: W copies of (Cin, Cout) on the diagonal
    # so the MXU result lands directly in the lane-packed output layout.
    pw = jnp.transpose(pw_w[:, :, 0, 0], (1, 0)).astype(jnp.float32)  # (Cin, Cout)
    pw_bd = jnp.einsum("wv,cd->wcvd", jnp.eye(W, dtype=jnp.float32), pw)
    pw_bd = pw_bd.reshape(W * Cin, W * Cout)
    if mxu_bf16:
        pw_bd = pw_bd.astype(jnp.bfloat16)   # BN2 scale stays in f32 (accuracy)
    s2_tile = jnp.tile(inv2[None, :], (1, W)).astype(jnp.float32)     # (1, W*Cout)
    b2_tile = jnp.tile((beta2 - mean2 * inv2)[None, :], (1, W))       # (1, W*Cout)

    # --- input prep: NCHW -> NHWC + 1px zero halo + lane packing ------------
    # (one XLA fusion at the model boundary; elided if the surrounding model is
    #  channels-last end-to-end except for the small halo pad)
    x_nhwc = jnp.transpose(x_nchw, (0, 2, 3, 1))
    x_halo = jnp.pad(x_nhwc, ((0, 0), (1, 1), (1, 1), (0, 0)))
    x_packed = x_halo.reshape(N, H + 2, (W + 2) * Cin)

    if batch_tile is None:
        batch_tile = _pick_batch_tile(N, H, W, Cin, Cout,
                                      min_steps=min_grid_steps)
    assert N % batch_tile == 0, "batch_tile must divide N"
    grid = (N // batch_tile,)

    kernel = functools.partial(
        _dwsep_kernel, H=H, W=W, Cin=Cin, Cout=Cout, batch_tile=batch_tile,
        mxu_bf16=mxu_bf16)

    out_packed = pl.pallas_call(
        kernel,
        out_shape=jax.ShapeDtypeStruct((N, H, W * Cout), jnp.float32),
        grid_spec=pltpu.PrefetchScalarGridSpec(
            num_scalar_prefetch=0,
            grid=grid,
            in_specs=[
                pl.BlockSpec((batch_tile, H + 2, (W + 2) * Cin),
                             lambda n: (n, 0, 0)),
                pl.BlockSpec((9, W * Cin), lambda n: (0, 0)),
                pl.BlockSpec((1, W * Cin), lambda n: (0, 0)),
                pl.BlockSpec((W * Cin, W * Cout), lambda n: (0, 0)),
                pl.BlockSpec((1, W * Cout), lambda n: (0, 0)),
                pl.BlockSpec((1, W * Cout), lambda n: (0, 0)),
            ],
            out_specs=pl.BlockSpec((batch_tile, H, W * Cout),
                                   lambda n: (n, 0, 0)),
        ),
        compiler_params=pltpu.CompilerParams(
            dimension_semantics=("parallel",)),   # batch tiles are independent
    )(x_packed, dw_tile, b1_tile, pw_bd, s2_tile, b2_tile)

    # Metadata-only split of the packed lane axis, then back to NCHW.
    return out_packed.reshape(N, H, W, Cout).transpose(0, 3, 1, 2)


def _reference_nchw(x, dw_w, pw_w, bn1, bn2, eps=1e-5):
    """Pure-JAX NCHW reference (inference-mode BN) for validation."""
    Cin = x.shape[1]
    g1, b1, m1, v1 = bn1
    g2, b2, m2, v2 = bn2
    y = lax.conv_general_dilated(
        x, dw_w, window_strides=(1, 1), padding="SAME",
        dimension_numbers=("NCHW", "OIHW", "NCHW"),
        feature_group_count=Cin, precision=lax.Precision.HIGHEST)
    y = (y - m1[:, None, None]) * (g1 / jnp.sqrt(v1 + eps))[:, None, None] \
        + b1[:, None, None]
    y = jnp.clip(y, 0.0, 6.0)
    z = lax.conv_general_dilated(
        y, pw_w, window_strides=(1, 1), padding="VALID",
        dimension_numbers=("NCHW", "OIHW", "NCHW"),
        precision=lax.Precision.HIGHEST)
    z = (z - m2[:, None, None]) * (g2 / jnp.sqrt(v2 + eps))[:, None, None] \
        + b2[:, None, None]
    z = jnp.clip(z, 0.0, 6.0)
    return z


if __name__ == "__main__":
    key = jax.random.PRNGKey(0)
    N, Cin, H, W, Cout = 4, 4, 16, 16, 8
    eps = 1e-5

    ks = jax.random.split(key, 11)
    x = jax.random.normal(ks[0], (N, Cin, H, W), dtype=jnp.float32)
    dw_w = 0.3 * jax.random.normal(ks[1], (Cin, 1, 3, 3), dtype=jnp.float32)
    pw_w = 0.3 * jax.random.normal(ks[2], (Cout, Cin, 1, 1), dtype=jnp.float32)

    bn1 = (1.0 + 0.1 * jax.random.normal(ks[3], (Cin,), dtype=jnp.float32),
           0.1 * jax.random.normal(ks[4], (Cin,), dtype=jnp.float32),
           0.1 * jax.random.normal(ks[5], (Cin,), dtype=jnp.float32),
           1.0 + 0.1 * jnp.abs(jax.random.normal(ks[6], (Cin,), dtype=jnp.float32)))
    bn2 = (1.0 + 0.1 * jax.random.normal(ks[7], (Cout,), dtype=jnp.float32),
           0.1 * jax.random.normal(ks[8], (Cout,), dtype=jnp.float32),
           0.1 * jax.random.normal(ks[9], (Cout,), dtype=jnp.float32),
           1.0 + 0.1 * jnp.abs(jax.random.normal(ks[10], (Cout,), dtype=jnp.float32)))

    ref = _reference_nchw(x, dw_w, pw_w, bn1, bn2, eps)

    # 1) f32 MXU operands (auto batch_tile -> bt=1, 4 grid steps).
    out_f32 = depthwise_separable_conv_v2(
        x, dw_w, pw_w, bn1, bn2, eps=eps, mxu_bf16=False)
    out_f32 = jax.block_until_ready(out_f32)
    assert out_f32.shape == (N, Cout, H, W)
    assert jnp.allclose(out_f32, ref, atol=5e-2, rtol=5e-2), "f32 path mismatch"

    # 2) bf16 MXU operands (f32 accumulation, BN2 scale applied in f32),
    #    explicit batch_tile=2 -> 2 grid steps; looser tolerance for bf16.
    out_bf16 = depthwise_separable_conv_v2(
        x, dw_w, pw_w, bn1, bn2, eps=eps, batch_tile=2, mxu_bf16=True)
    out_bf16 = jax.block_until_ready(out_bf16)
    assert out_bf16.shape == (N, Cout, H, W)
    assert jnp.allclose(out_bf16, ref, atol=1e-1, rtol=1e-1), "bf16 path mismatch"

    print("KERNEL_OK")
</pallas_src>

<mosaic_0001>
module attributes {stable_mosaic.version = 11 : i64} {
  func.func @_dwsep_kernel(%arg0: i32, %arg1: memref<1x18x72xf32, #tpu.memory_space<vmem>>, %arg2: memref<9x64xf32, #tpu.memory_space<vmem>>, %arg3: memref<1x64xf32, #tpu.memory_space<vmem>>, %arg4: memref<64x128xf32, #tpu.memory_space<vmem>>, %arg5: memref<1x128xf32, #tpu.memory_space<vmem>>, %arg6: memref<1x128xf32, #tpu.memory_space<vmem>>, %arg7: memref<1x16x128xf32, #tpu.memory_space<vmem>>) attributes {dimension_semantics = [#tpu.dimension_semantics<parallel>], iteration_bounds = array<i64: 4>, scalar_prefetch = 0 : i64, scratch_operands = 0 : i64, tpu.core_type = #tpu.core_type<tc>, window_params = [{transform_indices = @transform_0, window_bounds = array<i64: 1, 18, 72>}, {pipeline_mode = #tpu.pipeline_mode<synchronous>, transform_indices = @transform_1, window_bounds = array<i64: 9, 64>}, {pipeline_mode = #tpu.pipeline_mode<synchronous>, transform_indices = @transform_2, window_bounds = array<i64: 1, 64>}, {pipeline_mode = #tpu.pipeline_mode<synchronous>, transform_indices = @transform_3, window_bounds = array<i64: 64, 128>}, {pipeline_mode = #tpu.pipeline_mode<synchronous>, transform_indices = @transform_4, window_bounds = array<i64: 1, 128>}, {pipeline_mode = #tpu.pipeline_mode<synchronous>, transform_indices = @transform_5, window_bounds = array<i64: 1, 128>}, {transform_indices = @transform_6, window_bounds = array<i64: 1, 16, 128>}]} {
    %c0 = arith.constant 0 : index
    %c0_0 = arith.constant 0 : index
    %c0_1 = arith.constant 0 : index
    %0 = vector.load %arg1[%c0, %c0_0, %c0_1] : memref<1x18x72xf32, #tpu.memory_space<vmem>>, vector<1x18x72xf32>
    %c0_2 = arith.constant 0 : index
    %c0_3 = arith.constant 0 : index
    %1 = vector.load %arg2[%c0_2, %c0_3] : memref<9x64xf32, #tpu.memory_space<vmem>>, vector<9x64xf32>
    %2 = vector.extract_strided_slice %0 {offsets = [0, 0, 0], sizes = [1, 16, 64], strides = [1, 1, 1]} : vector<1x18x72xf32> to vector<1x16x64xf32>
    %3 = vector.extract_strided_slice %1 {offsets = [0, 0], sizes = [1, 64], strides = [1, 1]} : vector<9x64xf32> to vector<1x64xf32>
    %4 = vector.shape_cast %3 : vector<1x64xf32> to vector<1x1x64xf32>
    %5 = vector.broadcast %4 : vector<1x1x64xf32> to vector<1x16x64xf32>
    %6 = arith.mulf %2, %5 : vector<1x16x64xf32>
    %7 = vector.extract_strided_slice %0 {offsets = [0, 0, 4], sizes = [1, 16, 64], strides = [1, 1, 1]} : vector<1x18x72xf32> to vector<1x16x64xf32>
    %8 = vector.extract_strided_slice %1 {offsets = [1, 0], sizes = [1, 64], strides = [1, 1]} : vector<9x64xf32> to vector<1x64xf32>
    %9 = vector.shape_cast %8 : vector<1x64xf32> to vector<1x1x64xf32>
    %10 = vector.broadcast %9 : vector<1x1x64xf32> to vector<1x16x64xf32>
    %11 = arith.mulf %7, %10 : vector<1x16x64xf32>
    %12 = arith.addf %6, %11 : vector<1x16x64xf32>
    %13 = vector.extract_strided_slice %0 {offsets = [0, 0, 8], sizes = [1, 16, 64], strides = [1, 1, 1]} : vector<1x18x72xf32> to vector<1x16x64xf32>
    %14 = vector.extract_strided_slice %1 {offsets = [2, 0], sizes = [1, 64], strides = [1, 1]} : vector<9x64xf32> to vector<1x64xf32>
    %15 = vector.shape_cast %14 : vector<1x64xf32> to vector<1x1x64xf32>
    %16 = vector.broadcast %15 : vector<1x1x64xf32> to vector<1x16x64xf32>
    %17 = arith.mulf %13, %16 : vector<1x16x64xf32>
    %18 = arith.addf %12, %17 : vector<1x16x64xf32>
    %19 = vector.extract_strided_slice %0 {offsets = [0, 1, 0], sizes = [1, 16, 64], strides = [1, 1, 1]} : vector<1x18x72xf32> to vector<1x16x64xf32>
    %20 = vector.extract_strided_slice %1 {offsets = [3, 0], sizes = [1, 64], strides = [1, 1]} : vector<9x64xf32> to vector<1x64xf32>
    %21 = vector.shape_cast %20 : vector<1x64xf32> to vector<1x1x64xf32>
    %22 = vector.broadcast %21 : vector<1x1x64xf32> to vector<1x16x64xf32>
    %23 = arith.mulf %19, %22 : vector<1x16x64xf32>
    %24 = arith.addf %18, %23 : vector<1x16x64xf32>
    %25 = vector.extract_strided_slice %0 {offsets = [0, 1, 4], sizes = [1, 16, 64], strides = [1, 1, 1]} : vector<1x18x72xf32> to vector<1x16x64xf32>
    %26 = vector.extract_strided_slice %1 {offsets = [4, 0], sizes = [1, 64], strides = [1, 1]} : vector<9x64xf32> to vector<1x64xf32>
    %27 = vector.shape_cast %26 : vector<1x64xf32> to vector<1x1x64xf32>
    %28 = vector.broadcast %27 : vector<1x1x64xf32> to vector<1x16x64xf32>
    %29 = arith.mulf %25, %28 : vector<1x16x64xf32>
    %30 = arith.addf %24, %29 : vector<1x16x64xf32>
    %31 = vector.extract_strided_slice %0 {offsets = [0, 1, 8], sizes = [1, 16, 64], strides = [1, 1, 1]} : vector<1x18x72xf32> to vector<1x16x64xf32>
    %32 = vector.extract_strided_slice %1 {offsets = [5, 0], sizes = [1, 64], strides = [1, 1]} : vector<9x64xf32> to vector<1x64xf32>
    %33 = vector.shape_cast %32 : vector<1x64xf32> to vector<1x1x64xf32>
    %34 = vector.broadcast %33 : vector<1x1x64xf32> to vector<1x16x64xf32>
    %35 = arith.mulf %31, %34 : vector<1x16x64xf32>
    %36 = arith.addf %30, %35 : vector<1x16x64xf32>
    %37 = vector.extract_strided_slice %0 {offsets = [0, 2, 0], sizes = [1, 16, 64], strides = [1, 1, 1]} : vector<1x18x72xf32> to vector<1x16x64xf32>
    %38 = vector.extract_strided_slice %1 {offsets = [6, 0], sizes = [1, 64], strides = [1, 1]} : vector<9x64xf32> to vector<1x64xf32>
    %39 = vector.shape_cast %38 : vector<1x64xf32> to vector<1x1x64xf32>
    %40 = vector.broadcast %39 : vector<1x1x64xf32> to vector<1x16x64xf32>
    %41 = arith.mulf %37, %40 : vector<1x16x64xf32>
    %42 = arith.addf %36, %41 : vector<1x16x64xf32>
    %43 = vector.extract_strided_slice %0 {offsets = [0, 2, 4], sizes = [1, 16, 64], strides = [1, 1, 1]} : vector<1x18x72xf32> to vector<1x16x64xf32>
    %44 = vector.extract_strided_slice %1 {offsets = [7, 0], sizes = [1, 64], strides = [1, 1]} : vector<9x64xf32> to vector<1x64xf32>
    %45 = vector.shape_cast %44 : vector<1x64xf32> to vector<1x1x64xf32>
    %46 = vector.broadcast %45 : vector<1x1x64xf32> to vector<1x16x64xf32>
    %47 = arith.mulf %43, %46 : vector<1x16x64xf32>
    %48 = arith.addf %42, %47 : vector<1x16x64xf32>
    %49 = vector.extract_strided_slice %0 {offsets = [0, 2, 8], sizes = [1, 16, 64], strides = [1, 1, 1]} : vector<1x18x72xf32> to vector<1x16x64xf32>
    %50 = vector.extract_strided_slice %1 {offsets = [8, 0], sizes = [1, 64], strides = [1, 1]} : vector<9x64xf32> to vector<1x64xf32>
    %51 = vector.shape_cast %50 : vector<1x64xf32> to vector<1x1x64xf32>
    %52 = vector.broadcast %51 : vector<1x1x64xf32> to vector<1x16x64xf32>
    %53 = arith.mulf %49, %52 : vector<1x16x64xf32>
    %54 = arith.addf %48, %53 : vector<1x16x64xf32>
    %c0_4 = arith.constant 0 : index
    %c0_5 = arith.constant 0 : index
    %55 = vector.load %arg3[%c0_4, %c0_5] : memref<1x64xf32, #tpu.memory_space<vmem>>, vector<1x64xf32>
    %56 = vector.shape_cast %55 : vector<1x64xf32> to vector<1x1x64xf32>
    %57 = vector.broadcast %56 : vector<1x1x64xf32> to vector<1x16x64xf32>
    %58 = arith.addf %54, %57 : vector<1x16x64xf32>
    %cst = arith.constant 0.000000e+00 : f32
    %cst_6 = arith.constant 6.000000e+00 : f32
    %59 = vector.broadcast %cst : f32 to vector<1x16x64xf32>
    %60 = arith.maximumf %59, %58 : vector<1x16x64xf32>
    %61 = vector.broadcast %cst_6 : f32 to vector<1x16x64xf32>
    %62 = arith.minimumf %61, %60 : vector<1x16x64xf32>
    %63 = vector.shape_cast %62 : vector<1x16x64xf32> to vector<16x64xf32>
    %c0_7 = arith.constant 0 : index
    %c0_8 = arith.constant 0 : index
    %64 = vector.load %arg4[%c0_7, %c0_8] : memref<64x128xf32, #tpu.memory_space<vmem>>, vector<64x128xf32>
    %cst_9 = arith.constant dense<0.000000e+00> : vector<16x128xf32>
    %65 = tpu.matmul %63, %64, %cst_9 {dimension_numbers = #tpu.dot_dimension_numbers<[1], [0], [0], [1], [0, 0, 1, 1], [], []>} : vector<16x64xf32>, vector<64x128xf32>, vector<16x128xf32> -> vector<16x128xf32>
    %c0_10 = arith.constant 0 : index
    %c0_11 = arith.constant 0 : index
    %66 = vector.load %arg5[%c0_10, %c0_11] : memref<1x128xf32, #tpu.memory_space<vmem>>, vector<1x128xf32>
    %67 = vector.broadcast %66 : vector<1x128xf32> to vector<16x128xf32>
    %68 = arith.mulf %65, %67 : vector<16x128xf32>
    %c0_12 = arith.constant 0 : index
    %c0_13 = arith.constant 0 : index
    %69 = vector.load %arg6[%c0_12, %c0_13] : memref<1x128xf32, #tpu.memory_space<vmem>>, vector<1x128xf32>
    %70 = vector.broadcast %69 : vector<1x128xf32> to vector<16x128xf32>
    %71 = arith.addf %68, %70 : vector<16x128xf32>
    %cst_14 = arith.constant 0.000000e+00 : f32
    %cst_15 = arith.constant 6.000000e+00 : f32
    %72 = vector.broadcast %cst_14 : f32 to vector<16x128xf32>
    %73 = arith.maximumf %72, %71 : vector<16x128xf32>
    %74 = vector.broadcast %cst_15 : f32 to vector<16x128xf32>
    %75 = arith.minimumf %74, %73 : vector<16x128xf32>
    %76 = vector.shape_cast %75 : vector<16x128xf32> to vector<1x16x128xf32>
    %c0_16 = arith.constant 0 : index
    %c0_17 = arith.constant 0 : index
    %c0_18 = arith.constant 0 : index
    %77 = vector.load %arg7[%c0_16, %c0_17, %c0_18] : memref<1x16x128xf32, #tpu.memory_space<vmem>>, vector<1x16x128xf32>
    tpu.vector_store %arg7[%c0_16, %c0_17, %c0_18], %76 {strides = array<i32>} : memref<1x16x128xf32, #tpu.memory_space<vmem>>, vector<1x16x128xf32>,
    return
  }
  func.func @transform_0(%arg0: i32) -> (i32, i32, i32) {
    %c0_i32 = arith.constant 0 : i32
    %c0_i32_0 = arith.constant 0 : i32
    %c0_i32_1 = arith.constant 0 : i32
    return %arg0, %c0_i32, %c0_i32_0 : i32, i32, i32
  }
  func.func @transform_1(%arg0: i32) -> (i32, i32) {
    %c0_i32 = arith.constant 0 : i32
    %c0_i32_0 = arith.constant 0 : i32
    %c0_i32_1 = arith.constant 0 : i32
    return %c0_i32, %c0_i32_0 : i32, i32
  }
  func.func @transform_2(%arg0: i32) -> (i32, i32) {
    %c0_i32 = arith.constant 0 : i32
    %c0_i32_0 = arith.constant 0 : i32
    %c0_i32_1 = arith.constant 0 : i32
    return %c0_i32, %c0_i32_0 : i32, i32
  }
  func.func @transform_3(%arg0: i32) -> (i32, i32) {
    %c0_i32 = arith.constant 0 : i32
    %c0_i32_0 = arith.constant 0 : i32
    %c0_i32_1 = arith.constant 0 : i32
    return %c0_i32, %c0_i32_0 : i32, i32
  }
  func.func @transform_4(%arg0: i32) -> (i32, i32) {
    %c0_i32 = arith.constant 0 : i32
    %c0_i32_0 = arith.constant 0 : i32
    %c0_i32_1 = arith.constant 0 : i32
    return %c0_i32, %c0_i32_0 : i32, i32
  }
  func.func @transform_5(%arg0: i32) -> (i32, i32) {
    %c0_i32 = arith.constant 0 : i32
    %c0_i32_0 = arith.constant 0 : i32
    %c0_i32_1 = arith.constant 0 : i32
    return %c0_i32, %c0_i32_0 : i32, i32
  }
  func.func @transform_6(%arg0: i32) -> (i32, i32, i32) {
    %c0_i32 = arith.constant 0 : i32
    %c0_i32_0 = arith.constant 0 : i32
    %c0_i32_1 = arith.constant 0 : i32
    return %arg0, %c0_i32, %c0_i32_0 : i32, i32, i32
  }
}

</mosaic_0001>

<llo_original>
// kernel: tpu_custom_call.1
$region0: #{tpu_custom_call.1}
  #allocation0 [shape = 'u32[]', space=smem, size = 0x4, offset = 0x4, fixed_abs, tag = 'smem constant byte address 0x4 - core index']
  #allocation1 [shape = 'u32[72,128]{1,0:T(1,128)}', space=vmem, size = 0x9000, scoped, tag = 'internal scratch']
  %s0 = inlined_call_operand.vmem [shape: f32[4,18,72], index: 0, kind: input, shape index: {}]
  %s1 = inlined_call_operand.vmem [shape: f32[9,64], index: 1, kind: input, shape index: {}]
  %s2 = inlined_call_operand.vmem [shape: f32[1,64], index: 2, kind: input, shape index: {}]
  %s3 = inlined_call_operand.vmem [shape: f32[64,128], index: 3, kind: input, shape index: {}]
  %s4 = inlined_call_operand.vmem [shape: f32[1,128], index: 4, kind: input, shape index: {}]
  %s5 = inlined_call_operand.vmem [shape: f32[1,128], index: 5, kind: input, shape index: {}]
  %s6 = inlined_call_operand.hbm [shape: f32[4,16,128], index: 6, kind: output, shape index: {}]
  %s7 = sld [smem:[#allocation0]]
  $region57: #{tpu_custom_call.1} parent=0
    _
  %s9 = ssub.s32 1, %s7
  %s10 = scalar_select 0, %s9, %s7
  $region1: #{tpu_custom_call.1} parent=0
    #allocation2 [shape = 'u8[16384]{0}', space=vmem, size = 0x4000, scoped, tag = 'output window, operand 0']
    #allocation3 [shape = 's32[2]{0}', space=sflag, size = 0x8, scoped, tag = 'scoped memory for tpu_custom_call.1']
    %11 = vsyncpa [#allocation3], 0
    %s12 = scalar_lea.sflag [#allocation3], 1
    %13 = vsyncpa %s12, 0
    loop: start=0, step=1, limit=6
    $region2: #{tpu_custom_call.1} parent=1 // loop_pre_header
      _
    $region3: #{tpu_custom_call.1} parent=1 // loop_header
      %s15 = sphi 0, %s19
      %p16 = scmp.ge.s32.totalorder %s15, 6
      %s25 = sphi 0, %s27
      %s28 = sphi 0, %s25
      %s29 = sphi 0, %s28
      %s45 = sphi 0, %s29
      %s49 = sphi 0, %s49
      %s51 = sphi 0, %s49
      %s52 = sphi 0, %s51
      %s66 = sphi 0, %s52
      %s70 = sphi 0, %s70
      %s72 = sphi 0, %s70
      %s73 = sphi 0, %s72
      %s87 = sphi 0, %s73
      %s91 = sphi 0, %s91
      %s93 = sphi 0, %s91
      %s94 = sphi 0, %s93
      %s108 = sphi 0, %s94
      %s112 = sphi 0, %s112
      %s114 = sphi 0, %s112
      %s115 = sphi 0, %s114
      %s129 = sphi 0, %s115
      %s133 = sphi 0, %s133
      %s135 = sphi 0, %s133
      %s136 = sphi 0, %s135
      %s150 = sphi 0, %s136
      %s156 = sphi 0, %s158
      %s159 = sphi 0, %s156
      %s160 = sphi 0, %s159
      %s176 = sphi 0, %s160
    $region4: #{tpu_custom_call.1} parent=1 // loop_header_branch
      %18 = sbr.rel (%p16) target = $region8
    $region5: #{tpu_custom_call.1} parent=1 // loop_body
      %s20 = ssub.s32 %s15, 1
      %s21 = ssub.s32 %s15, 2
      %s22 = sadd.s32 %s15, 1
      %s23 = ssub.s32 %s15, %s22
      %p24 = scmp.eq.s32.totalorder %s23, 0
      %s26 = sadd.s32 %s25, 1
      %s27 = scalar_select %p24, %s25, %s26
      %p30 = pneg %p24
      %p31 = scmp.eq.s32.totalorder %s15, 3
      %p32 = por %p30, %p31
      %p33 = scmp.ne.s32.totalorder %s25, %s28
      %p34 = scmp.eq.s32.totalorder %s15, 0
      %p35 = por %p33, %p34
      %p36 = scmp.ne.s32.totalorder %s25, %s28
      %p37 = scmp.eq.s32.totalorder %s20, 3
      %p38 = por %p36, %p37
      %p39 = scmp.ne.s32.totalorder %s28, %s29
      %p40 = scmp.eq.s32.totalorder %s20, 0
      %p41 = por %p39, %p40
      %p42 = scmp.ne.s32.totalorder %s28, %s29
      %p43 = scmp.eq.s32.totalorder %s21, 3
      %p44 = por %p42, %p43
      %p46 = scmp.ne.s32.totalorder %s29, %s45
      %p47 = scmp.eq.s32.totalorder %s21, 0
      %p48 = por %p46, %p47
      %s50 = sadd.s32 %s49, 1
      %p53 = scmp.eq.s32.totalorder %s15, 3
      %p54 = scmp.ne.s32.totalorder %s49, %s51
      %p55 = scmp.eq.s32.totalorder %s15, 0
      %p56 = por %p54, %p55
      %p57 = scmp.ne.s32.totalorder %s49, %s51
      %p58 = scmp.eq.s32.totalorder %s20, 3
      %p59 = por %p57, %p58
      %p60 = scmp.ne.s32.totalorder %s51, %s52
      %p61 = scmp.eq.s32.totalorder %s20, 0
      %p62 = por %p60, %p61
      %p63 = scmp.ne.s32.totalorder %s51, %s52
      %p64 = scmp.eq.s32.totalorder %s21, 3
      %p65 = por %p63, %p64
      %p67 = scmp.ne.s32.totalorder %s52, %s66
      %p68 = scmp.eq.s32.totalorder %s21, 0
      %p69 = por %p67, %p68
      %s71 = sadd.s32 %s70, 1
      %p74 = scmp.eq.s32.totalorder %s15, 3
      %p75 = scmp.ne.s32.totalorder %s70, %s72
      %p76 = scmp.eq.s32.totalorder %s15, 0
      %p77 = por %p75, %p76
      %p78 = scmp.ne.s32.totalorder %s70, %s72
      %p79 = scmp.eq.s32.totalorder %s20, 3
      %p80 = por %p78, %p79
      %p81 = scmp.ne.s32.totalorder %s72, %s73
      %p82 = scmp.eq.s32.totalorder %s20, 0
      %p83 = por %p81, %p82
      %p84 = scmp.ne.s32.totalorder %s72, %s73
      %p85 = scmp.eq.s32.totalorder %s21, 3
      %p86 = por %p84, %p85
      %p88 = scmp.ne.s32.totalorder %s73, %s87
      %p89 = scmp.eq.s32.totalorder %s21, 0
      %p90 = por %p88, %p89
      %s92 = sadd.s32 %s91, 1
      %p95 = scmp.eq.s32.totalorder %s15, 3
      %p96 = scmp.ne.s32.totalorder %s91, %s93
      %p97 = scmp.eq.s32.totalorder %s15, 0
      %p98 = por %p96, %p97
      %p99 = scmp.ne.s32.totalorder %s91, %s93
      %p100 = scmp.eq.s32.totalorder %s20, 3
      %p101 = por %p99, %p100
      %p102 = scmp.ne.s32.totalorder %s93, %s94
      %p103 = scmp.eq.s32.totalorder %s20, 0
      %p104 = por %p102, %p103
      %p105 = scmp.ne.s32.totalorder %s93, %s94
      %p106 = scmp.eq.s32.totalorder %s21, 3
      %p107 = por %p105, %p106
      %p109 = scmp.ne.s32.totalorder %s94, %s108
      %p110 = scmp.eq.s32.totalorder %s21, 0
      %p111 = por %p109, %p110
      %s113 = sadd.s32 %s112, 1
      %p116 = scmp.eq.s32.totalorder %s15, 3
      %p117 = scmp.ne.s32.totalorder %s112, %s114
      %p118 = scmp.eq.s32.totalorder %s15, 0
      %p119 = por %p117, %p118
      %p120 = scmp.ne.s32.totalorder %s112, %s114
      %p121 = scmp.eq.s32.totalorder %s20, 3
      %p122 = por %p120, %p121
      %p123 = scmp.ne.s32.totalorder %s114, %s115
      %p124 = scmp.eq.s32.totalorder %s20, 0
      %p125 = por %p123, %p124
      %p126 = scmp.ne.s32.totalorder %s114, %s115
      %p127 = scmp.eq.s32.totalorder %s21, 3
      %p128 = por %p126, %p127
      %p130 = scmp.ne.s32.totalorder %s115, %s129
      %p131 = scmp.eq.s32.totalorder %s21, 0
      %p132 = por %p130, %p131
      %s134 = sadd.s32 %s133, 1
      %p137 = scmp.eq.s32.totalorder %s15, 3
      %p138 = scmp.ne.s32.totalorder %s133, %s135
      %p139 = scmp.eq.s32.totalorder %s15, 0
      %p140 = por %p138, %p139
      %p141 = scmp.ne.s32.totalorder %s133, %s135
      %p142 = scmp.eq.s32.totalorder %s20, 3
      %p143 = por %p141, %p142
      %p144 = scmp.ne.s32.totalorder %s135, %s136
      %p145 = scmp.eq.s32.totalorder %s20, 0
      %p146 = por %p144, %p145
      %p147 = scmp.ne.s32.totalorder %s135, %s136
      %p148 = scmp.eq.s32.totalorder %s21, 3
      %p149 = por %p147, %p148
      %p151 = scmp.ne.s32.totalorder %s136, %s150
      %p152 = scmp.eq.s32.totalorder %s21, 0
      %p153 = por %p151, %p152
      %s154 = ssub.s32 %s15, %s22
      %p155 = scmp.eq.s32.totalorder %s154, 0
      %s157 = sadd.s32 %s156, 1
      %s158 = scalar_select %p155, %s156, %s157
      %p161 = pneg %p155
      %p162 = scmp.eq.s32.totalorder %s15, 3
      %p163 = por %p161, %p162
      %p164 = scmp.ne.s32.totalorder %s156, %s159
      %p165 = scmp.eq.s32.totalorder %s15, 0
      %p166 = por %p164, %p165
      %p167 = scmp.ne.s32.totalorder %s156, %s159
      %p168 = scmp.eq.s32.totalorder %s20, 3
      %p169 = por %p167, %p168
      %p170 = scmp.ne.s32.totalorder %s159, %s160
      %p171 = scmp.eq.s32.totalorder %s20, 0
      %p172 = por %p170, %p171
      %p173 = scmp.ne.s32.totalorder %s159, %s160
      %p174 = scmp.eq.s32.totalorder %s21, 3
      %p175 = por %p173, %p174
      %p177 = scmp.ne.s32.totalorder %s160, %s176
      %p178 = scmp.eq.s32.totalorder %s21, 0
      %p179 = por %p177, %p178
      %p180 = scmp.le.s32.totalorder 1, %s15
      %p181 = scmp.lt.s32.totalorder %s15, 5
      %p182 = pnand %p180, %p181
      %p183 = pneg %p182
      // Predicated region
      $region9: #{tpu_custom_call.1} parent=5 // pred_check
        _
      $region10: #{tpu_custom_call.1} parent=5 // pred_check_branch
        %185 = sbr.rel (%p182) target = $region12
      $region11: #{tpu_custom_call.1} parent=5 // pred_region
        %s186 = ssub.s32 %s15, 1
        // Predicated region
        $region13: #{tpu_custom_call.1} parent=11 // pred_check
          %p187 = pneg %p62
        $region14: #{tpu_custom_call.1} parent=11 // pred_check_branch
          %189 = sbr.rel (%p187) target = $region16
        $region15: #{tpu_custom_call.1} parent=11 // pred_region
          _
        $region16: #{tpu_custom_call.1} parent=11 // pred_fallthru
          _
        // Predicated region
        $region17: #{tpu_custom_call.1} parent=11 // pred_check
          %p190 = pneg %p83
        $region18: #{tpu_custom_call.1} parent=11 // pred_check_branch
          %192 = sbr.rel (%p190) target = $region20
        $region19: #{tpu_custom_call.1} parent=11 // pred_region
          _
        $region20: #{tpu_custom_call.1} parent=11 // pred_fallthru
          _
        // Predicated region
        $region21: #{tpu_custom_call.1} parent=11 // pred_check
          %p193 = pneg %p104
        $region22: #{tpu_custom_call.1} parent=11 // pred_check_branch
          %195 = sbr.rel (%p193) target = $region24
        $region23: #{tpu_custom_call.1} parent=11 // pred_region
          _
        $region24: #{tpu_custom_call.1} parent=11 // pred_fallthru
          _
        // Predicated region
        $region25: #{tpu_custom_call.1} parent=11 // pred_check
          %p196 = pneg %p125
        $region26: #{tpu_custom_call.1} parent=11 // pred_check_branch
          %198 = sbr.rel (%p196) target = $region28
        $region27: #{tpu_custom_call.1} parent=11 // pred_region
          _
        $region28: #{tpu_custom_call.1} parent=11 // pred_fallthru
          _
        // Predicated region
        $region29: #{tpu_custom_call.1} parent=11 // pred_check
          %p199 = pneg %p146
        $region30: #{tpu_custom_call.1} parent=11 // pred_check_branch
          %201 = sbr.rel (%p199) target = $region32
        $region31: #{tpu_custom_call.1} parent=11 // pred_region
          _
        $region32: #{tpu_custom_call.1} parent=11 // pred_fallthru
          _
      $region12: #{tpu_custom_call.1} parent=5 // pred_fallthru
        _
      %p202 = scmp.lt.s32.totalorder %s15, 4
      // Predicated region
      $region33: #{tpu_custom_call.1} parent=5 // pred_check
        %p203 = pneg %p202
      $region34: #{tpu_custom_call.1} parent=5 // pred_check_branch
        %205 = sbr.rel (%p203) target = $region36
      $region35: #{tpu_custom_call.1} parent=5 // pred_region
        // Predicated region
        $region37: #{tpu_custom_call.1} parent=35 // pred_check
          %p206 = pneg %p35
        $region38: #{tpu_custom_call.1} parent=35 // pred_check_branch
          %208 = sbr.rel (%p206) target = $region40
        $region39: #{tpu_custom_call.1} parent=35 // pred_region
          %p209 = scmp.lt.s32.totalorder %s15, 3
          %s210 = scalar_select %p209, %s15, 3
          %s211 = smul.addr %s210, 3
          %s212 = smul.addr %s211, 8
          %s213 = scalar_lea.vmem %s0, %s212
        $region40: #{tpu_custom_call.1} parent=35 // pred_fallthru
          _
      $region36: #{tpu_custom_call.1} parent=5 // pred_fallthru
        _
      %p214 = scmp.le.s32.totalorder 1, %s15
      %p215 = scmp.lt.s32.totalorder %s15, 5
      %p216 = pnand %p214, %p215
      %p217 = pneg %p216
      // Predicated region
      $region41: #{tpu_custom_call.1} parent=5 // pred_check
        _
      $region42: #{tpu_custom_call.1} parent=5 // pred_check_branch
        %219 = sbr.rel (%p216) target = $region44
      $region43: #{tpu_custom_call.1} parent=5 // pred_region
        %s220 = ssub.s32 %s15, 1
        %p221 = scmp.lt.s32.totalorder %s20, 3
        %s222 = scalar_select %p221, %s20, 3
        %s223 = smul.addr %s222, 3
        %s224 = smul.addr %s223, 8
        %s225 = scalar_lea.vmem %s0, %s224
        %p226 = pneg %p41
        %p227 = pneg %p38
        %p228 = pneg %p62
        %p229 = pneg %p59
        %p230 = pneg %p83
        %p231 = pneg %p80
        %p232 = pneg %p104
        %p233 = pneg %p101
        %p234 = pneg %p125
        %p235 = pneg %p122
        %p236 = pneg %p146
        %p237 = pneg %p143
        %p238 = pneg %p172
        %p239 = pneg %p169
        %s240 = sand.u32 %s159, 1
        %s241 = scalar_lea.sflag [#allocation3], %s240
        %s242 = sand.u32 %s159, 1
        %s243 = smul.addr %s242, 16
        %s244 = scalar_lea.vmem [#allocation2], %s243
        %p245 = scmp.lt.s32.totalorder %s20, 3
        %s246 = scalar_select %p245, %s20, 3
        %s247 = smul.addr %s246, 3
        %s248 = smul.addr %s247, 8
        %s249 = scalar_lea.vmem %s0, %s248
        %v250 = vld [vmem:[%s249] sm:$0xff]
        %v251 = vld [vmem:[%s249 + $0x8] sm:$0xff]
        %v252 = vld [vmem:[%s249 + $0x10] sm:$0x3]
        %v253 = vld [vmem:[%s1] sm:$0xff]
        %v254 = vld [vmem:[%s1 + $0x8] sm:$0x1]
        %v255 = vperm.slane %v253, 0
        %v256 = vmul.f32 %v250, %v255
        %v257 = vmul.f32 %v251, %v255
        %v258 = vperm.slane %v253, 1
        %260 = vrot.lane.b32.xlu0 %v258, 4
        %v261 = vpop.permute.xlu0 %260
        %v263 = vmul.f32 %v250, %v261
        %v264 = vmul.f32 %v251, %v261
        %267 = vrot.lane.b32.xlu0 %v263, 124
        %v268 = vpop.permute.xlu0 %267
        %269 = vrot.lane.b32.xlu0 %v264, 124
        %v270 = vpop.permute.xlu0 %269
        %v273 = vadd.f32 %v256, %v268
        %v274 = vadd.f32 %v257, %v270
        %v275 = vperm.slane %v253, 2
        %277 = vrot.lane.b32.xlu0 %v275, 8
        %v278 = vpop.permute.xlu0 %277
        %v280 = vmul.f32 %v250, %v278
        %v281 = vmul.f32 %v251, %v278
        %284 = vrot.lane.b32.xlu0 %v280, 120
        %v285 = vpop.permute.xlu0 %284
        %286 = vrot.lane.b32.xlu0 %v281, 120
        %v287 = vpop.permute.xlu0 %286
        %v290 = vadd.f32 %v273, %v285
        %v291 = vadd.f32 %v274, %v287
        %v292 = vperm.slane %v253, 3
        %v293 = vmul.f32 %v250, %v292
        %v294 = vmul.f32 %v251, %v292
        %v295 = vmul.f32 %v252, %v292
        %vm299 = vcmask 1046528
        %v300 = vrot.slane %v293, 1
        %v301 = vrot.slane %v294, 1
        %v302 = vsel %vm299, %v300, %v301
        %v303 = vrot.slane %v295, 1
        %v304 = vsel %vm299, %v301, %v303
        %v307 = vadd.f32 %v290, %v302
        %v308 = vadd.f32 %v291, %v304
        %v309 = vperm.slane %v253, 4
        %311 = vrot.lane.b32.xlu0 %v309, 4
        %v312 = vpop.permute.xlu0 %311
        %v314 = vmul.f32 %v250, %v312
        %v315 = vmul.f32 %v251, %v312
        %v316 = vmul.f32 %v252, %v312
        %v320 = vrot.slane %v314, 1
        %v321 = vrot.slane %v315, 1
        %v322 = vsel %vm299, %v320, %v321
        %v323 = vrot.slane %v316, 1
        %v324 = vsel %vm299, %v321, %v323
        %325 = vrot.lane.b32.xlu0 %v322, 124
        %v326 = vpop.permute.xlu0 %325
        %327 = vrot.lane.b32.xlu0 %v324, 124
        %v328 = vpop.permute.xlu0 %327
        %v331 = vadd.f32 %v307, %v326
        %v332 = vadd.f32 %v308, %v328
        %v333 = vperm.slane %v253, 5
        %335 = vrot.lane.b32.xlu0 %v333, 8
        %v336 = vpop.permute.xlu0 %335
        %v338 = vmul.f32 %v250, %v336
        %v339 = vmul.f32 %v251, %v336
        %v340 = vmul.f32 %v252, %v336
        %v344 = vrot.slane %v338, 1
        %v345 = vrot.slane %v339, 1
        %v346 = vsel %vm299, %v344, %v345
        %v347 = vrot.slane %v340, 1
        %v348 = vsel %vm299, %v345, %v347
        %349 = vrot.lane.b32.xlu0 %v346, 120
        %v350 = vpop.permute.xlu0 %349
        %351 = vrot.lane.b32.xlu0 %v348, 120
        %v352 = vpop.permute.xlu0 %351
        %v355 = vadd.f32 %v331, %v350
        %v356 = vadd.f32 %v332, %v352
        %v357 = vperm.slane %v253, 6
        %v358 = vmul.f32 %v250, %v357
        %v359 = vmul.f32 %v251, %v357
        %v360 = vmul.f32 %v252, %v357
        %vm364 = vcmask 1045504
        %v365 = vrot.slane %v358, 2
        %v366 = vrot.slane %v359, 2
        %v367 = vsel %vm364, %v365, %v366
        %v368 = vrot.slane %v360, 2
        %v369 = vsel %vm364, %v366, %v368
        %v372 = vadd.f32 %v355, %v367
        %v373 = vadd.f32 %v356, %v369
        %v374 = vperm.slane %v253, 7
        %376 = vrot.lane.b32.xlu0 %v374, 4
        %v377 = vpop.permute.xlu0 %376
        %v379 = vmul.f32 %v250, %v377
        %v380 = vmul.f32 %v251, %v377
        %v381 = vmul.f32 %v252, %v377
        %v385 = vrot.slane %v379, 2
        %v386 = vrot.slane %v380, 2
        %v387 = vsel %vm364, %v385, %v386
        %v388 = vrot.slane %v381, 2
        %v389 = vsel %vm364, %v386, %v388
        %390 = vrot.lane.b32.xlu0 %v387, 124
        %v391 = vpop.permute.xlu0 %390
        %392 = vrot.lane.b32.xlu0 %v389, 124
        %v393 = vpop.permute.xlu0 %392
        %v396 = vadd.f32 %v372, %v391
        %v397 = vadd.f32 %v373, %v393
        %v398 = vperm.slane %v254, 0
        %400 = vrot.lane.b32.xlu0 %v398, 8
        %v401 = vpop.permute.xlu0 %400
        %v403 = vmul.f32 %v250, %v401
        %v404 = vmul.f32 %v251, %v401
        %v405 = vmul.f32 %v252, %v401
        %v409 = vrot.slane %v403, 2
        %v410 = vrot.slane %v404, 2
        %v411 = vsel %vm364, %v409, %v410
        %v412 = vrot.slane %v405, 2
        %v413 = vsel %vm364, %v410, %v412
        %414 = vrot.lane.b32.xlu0 %v411, 120
        %v415 = vpop.permute.xlu0 %414
        %416 = vrot.lane.b32.xlu0 %v413, 120
        %v417 = vpop.permute.xlu0 %416
        %v420 = vadd.f32 %v396, %v415
        %v421 = vadd.f32 %v397, %v417
        %v422 = vld [vmem:[%s2] sm:$0x1]
        %v424 = vperm.slane %v422, 0
        %v426 = vadd.f32 %v420, %v424
        %v427 = vadd.f32 %v421, %v424
        %v428 = vmax.f32 %v426, 0.0
        %v429 = vmax.f32 %v427, 0.0
        %v430 = vmin.f32 %v428, 6.0
        %v431 = vmin.f32 %v429, 6.0
        %v432 = vld [vmem:[%s3] sm:$0xff]
        %v433 = vld [vmem:[%s3 + $0x8] sm:$0xff]
        %v434 = vld [vmem:[%s3 + $0x10] sm:$0xff]
        %v435 = vld [vmem:[%s3 + $0x18] sm:$0xff]
        %v436 = vld [vmem:[%s3 + $0x20] sm:$0xff]
        %v437 = vld [vmem:[%s3 + $0x28] sm:$0xff]
        %v438 = vld [vmem:[%s3 + $0x30] sm:$0xff]
        %v439 = vld [vmem:[%s3 + $0x38] sm:$0xff]
        %vm440 = vcmask 523264
        %v442 = vsel %vm440, %v430, 0
        %v445 = vsel %vm440, %v431, 0
        %447 = vmatpush.msra.mxu0 0.0
        %448 = vmatpush.msra.mxu0 0.0
        %449 = vmatpush.msra.mxu0 0.0
        %450 = vmatpush.msra.mxu0 0.0
        %451 = vmatpush.msra.mxu0 0.0
        %452 = vmatpush.msra.mxu0 0.0
        %453 = vmatpush.msra.mxu0 0.0
        %454 = vmatpush.msra.mxu0 0.0
        %455 = vmatpush.msra.mxu0 %v439
        %456 = vmatpush.msra.mxu0 %v438
        %457 = vmatpush.msra.mxu0 %v437
        %458 = vmatpush.msra.mxu0 %v436
        %459 = vmatpush.msra.mxu0 %v435
        %460 = vmatpush.msra.mxu0 %v434
        %461 = vmatpush.msra.mxu0 %v433
        %462 = vmatpush.msra.mxu0 %v432
        %463 = vmatmul.f32.gmra.mxu0 %v442
        %v464 = vpop.f32.mrf.mxu0
        %v465 = vadd.f32 0.0, %v464
        %466 = vmatmul.f32.gmra.mxu0 %v445
        %v467 = vpop.f32.mrf.mxu0
        %v468 = vadd.f32 0.0, %v467
        %469 = vdwg.mxu0
        %v470 = vld [vmem:[%s4] sm:$0x1]
        %v472 = vperm.slane %v470, 0
        %v474 = vmul.f32 %v465, %v472
        %v475 = vmul.f32 %v468, %v472
        %v476 = vld [vmem:[%s5] sm:$0x1]
        %v478 = vperm.slane %v476, 0
        %v480 = vadd.f32 %v474, %v478
        %v481 = vadd.f32 %v475, %v478
        %v482 = vmax.f32 %v480, 0.0
        %v483 = vmax.f32 %v481, 0.0
        %v484 = vmin.f32 %v482, 6.0
        %v485 = vmin.f32 %v483, 6.0
        %486 = vst [vmem:[%s244] sm:$0xff] %v484
        %487 = vst [vmem:[%s244 + $0x8] sm:$0xff] %v485
        %s488 = sand.u32 %s159, 1
        %s489 = scalar_lea.sflag [#allocation3], %s488
        %s490 = sand.u32 %s159, 1
        %s491 = smul.addr %s490, 16
        %s492 = scalar_lea.vmem [#allocation2], %s491
        // Predicated region
        $region45: #{tpu_custom_call.1} parent=43 // pred_check
          %p493 = pneg %p169
        $region46: #{tpu_custom_call.1} parent=43 // pred_check_branch
          %495 = sbr.rel (%p493) target = $region48
        $region47: #{tpu_custom_call.1} parent=43 // pred_region
          %497 = vsyncadd %s489, 0
          %s498 = smul.addr %s20, 2
          %s499 = smul.addr %s498, 8
          %s500 = scalar_lea.hbm %s6, %s499
          %s501 = sshll.u32 %s492, 4
          %s502 = int_to_ptr.vmem [resolvable:$true] %s501
          %s503 = sshll.u32 %s500, 4
          %s504 = int_to_ptr.hbm [resolvable:$true] %s503
          %509 = dma.vmem_to_hbm [thread:$0]  %s502, 256, %s504, %s489, 128, 128, 8
        $region48: #{tpu_custom_call.1} parent=43 // pred_fallthru
          _
      $region44: #{tpu_custom_call.1} parent=5 // pred_fallthru
        _
      %p510 = scmp.le.s32.totalorder 2, %s15
      // Predicated region
      $region49: #{tpu_custom_call.1} parent=5 // pred_check
        %p511 = pneg %p510
      $region50: #{tpu_custom_call.1} parent=5 // pred_check_branch
        %513 = sbr.rel (%p511) target = $region52
      $region51: #{tpu_custom_call.1} parent=5 // pred_region
        %s514 = ssub.s32 %s15, 2
        // Predicated region
        $region53: #{tpu_custom_call.1} parent=51 // pred_check
          %p515 = pneg %p175
        $region54: #{tpu_custom_call.1} parent=51 // pred_check_branch
          %517 = sbr.rel (%p515) target = $region56
        $region55: #{tpu_custom_call.1} parent=51 // pred_region
          %s518 = sand.u32 %s160, 1
          %s519 = scalar_lea.sflag [#allocation3], %s518
          %s520 = sand.u32 %s160, 1
          %s521 = smul.addr %s520, 16
          %s522 = scalar_lea.vmem [#allocation2], %s521
          %524 = dma.done %s519, 256
        $region56: #{tpu_custom_call.1} parent=51 // pred_fallthru
          _
      $region52: #{tpu_custom_call.1} parent=5 // pred_fallthru
        _
    $region6: #{tpu_custom_call.1} parent=1 // loop_footer
      %s19 = sadd.s32 1, %s15
    $region7: #{tpu_custom_call.1} parent=1 // loop_footer_branch
      %14 = sbr.rel target = $region3
    $region8: #{tpu_custom_call.1} parent=1 // loop_exit
      _
    %525 = vsyncpa [#allocation3], 1
    %s526 = scalar_lea.sflag [#allocation3], 1
    %527 = vsyncpa %s526, 1

</llo_original>
